<compile_context>
chip_gen: v5e
topology: v5e:2x2
jax: 0.10.0
libtpu: 0.0.40
codegen_flags: <defaults>
</compile_context>

<pallas_src>
import jax
import jax.numpy as jnp
from jax import lax
from jax.experimental import pallas as pl
from jax.experimental.pallas import tpu as pltpu


_TAPS = tuple((dy, dx) for dy in (-1, 0, 1) for dx in (-1, 0, 1))


# --------------------------------------------------------------------------
# Parallel kernel: x-only halves of conv_ih / conv_hh (+ biases), all frames.
# --------------------------------------------------------------------------
def _make_xconv_kernel(H, W, C, n_frames):
    HW = H * W

    def kernel(x_ref, masks_ref, wx_ref, bx_ref, gx_ref, s_ref):
        masks = masks_ref[...]                                  # (9, HW)  f32
        wx = wx_ref[...]                                        # (3C, 9C) bf16
        # Hoist the bias broadcast out of the frame loop (no CSE inside loops).
        bias = jnp.broadcast_to(bx_ref[...], (3 * C, HW))       # (3C, HW) f32

        def frame(f, carry):
            x = x_ref[0, f].astype(jnp.float32)                 # (C, HW)
            # Stack the 9 shifted+masked taps along the contraction dimension.
            for tap, (dy, dx) in enumerate(_TAPS):
                if dy == 0 and dx == 0:
                    s_ref[tap * C:(tap + 1) * C, :] = x
                else:
                    shift = (-(dy * W + dx)) % HW
                    s_ref[tap * C:(tap + 1) * C, :] = (
                        pltpu.roll(x, shift, axis=1) * masks[tap:tap + 1, :])
            acc = jnp.dot(wx, s_ref[...].astype(jnp.bfloat16),
                          preferred_element_type=jnp.float32) + bias
            gx_ref[0, f] = acc.astype(gx_ref.dtype)
            return carry

        lax.fori_loop(0, n_frames, frame, 0)

    return kernel


# --------------------------------------------------------------------------
# Serial kernel: the ConvGRU recurrence (h-dependent halves only).
# --------------------------------------------------------------------------
def _make_convgru_kernel(H, W, C, t_block):
    HW = H * W

    def kernel(gx_ref, r0_ref, masks_ref, wh_ref, wrh_ref, o_ref, h_ref, s_ref):
        # Hidden state stays resident in VMEM across the whole time grid axis;
        # (re)initialize it from r at the first time block of each batch row.
        @pl.when(pl.program_id(1) == 0)
        def _():
            h_ref[...] = r0_ref[0].astype(jnp.float32)

        masks = masks_ref[...]                                  # (9, HW)  f32
        wh = wh_ref[...]                                        # (2C, 9C) bf16
        wrh = wrh_ref[...]                                      # (C, 9C)  bf16

        def stack_taps(v):
            # v: (C, HW) f32.  3x3 zero-padded conv taps realized as lane rolls
            # (XLU) + precomputed border masks, stacked into (9C, HW) so the
            # whole conv is ONE matmul with K = 9C.
            for tap, (dy, dx) in enumerate(_TAPS):
                if dy == 0 and dx == 0:
                    s_ref[tap * C:(tap + 1) * C, :] = v
                else:
                    shift = (-(dy * W + dx)) % HW
                    s_ref[tap * C:(tap + 1) * C, :] = (
                        pltpu.roll(v, shift, axis=1) * masks[tap:tap + 1, :])
            return s_ref[...].astype(jnp.bfloat16)

        def step(t, carry):
            gx = gx_ref[0, t].astype(jnp.float32)               # (3C, HW)
            h = h_ref[...]                                      # (C, HW) f32

            a_h = jnp.dot(wh, stack_taps(h),
                          preferred_element_type=jnp.float32)   # (2C, HW)
            rz = jax.nn.sigmoid(gx[:2 * C, :] + a_h)
            r = rz[:C, :]
            z = rz[C:, :]

            a_c = jnp.dot(wrh, stack_taps(r * h),
                          preferred_element_type=jnp.float32)   # (C, HW)
            c = jnp.tanh(gx[2 * C:, :] + a_c)

            h_new = (1.0 - z) * h + z * c
            h_ref[...] = h_new                                  # stays in VMEM
            o_ref[0, t] = h_new.astype(o_ref.dtype)
            return carry

        lax.fori_loop(0, t_block, step, 0)

    return kernel


# --------------------------------------------------------------------------
# Host-side helpers.
# --------------------------------------------------------------------------
def _border_masks(H, W):
    """(9, H*W) f32 validity masks for the 9 conv taps (zero padding)."""
    idx = jnp.arange(H * W, dtype=jnp.int32)
    y = idx // W
    x = idx % W
    rows = []
    for dy, dx in _TAPS:
        valid = (y + dy >= 0) & (y + dy < H) & (x + dx >= 0) & (x + dx < W)
        rows.append(valid.astype(jnp.float32))
    return jnp.stack(rows, axis=0)


def _prepare_params(wih, bih, whh, bhh):
    """HWIO conv weights -> lane-dense, tap-stacked (out, 9*Cin) bf16 matrices."""
    C = whh.shape[-1]
    wih_t = jnp.transpose(wih.reshape(9, 2 * C, 2 * C), (0, 2, 1))  # (9, 2C_out, 2C_in)
    whh_t = jnp.transpose(whh.reshape(9, 2 * C, C), (0, 2, 1))      # (9,  C_out, 2C_in)

    def flat(w):  # (9, O, C) -> (O, 9*C): contraction index = tap*C + in_channel
        return jnp.transpose(w, (1, 0, 2)).reshape(w.shape[1], -1)

    wx = flat(jnp.concatenate([wih_t[:, :, :C], whh_t[:, :, :C]], axis=1))  # (3C, 9C)
    wh = flat(wih_t[:, :, C:])                                              # (2C, 9C)
    wrh = flat(whh_t[:, :, C:])                                             # (C, 9C)
    bx = jnp.concatenate([bih, bhh])[:, None].astype(jnp.float32)           # (3C, 1)
    return (wx.astype(jnp.bfloat16), wh.astype(jnp.bfloat16),
            wrh.astype(jnp.bfloat16), bx)


def _compiler_params(semantics, est_bytes):
    # Explicit VMEM budget (with headroom) so the block sizes stay portable
    # across v5e (16 MiB scoped default) / v6e / v7x (64 MiB physical).
    limit = int(min(32 * 1024 * 1024, max(8 * 1024 * 1024, 4 * est_bytes)))
    return pltpu.CompilerParams(dimension_semantics=semantics,
                                vmem_limit_bytes=limit)


# --------------------------------------------------------------------------
# pallas_call wrappers.
# --------------------------------------------------------------------------
def _xconv_pallas(x, masks, wx, bx, H, W):
    """x: (B, T, C, HW) -> gx: (B, T, 3C, HW) = x-halves of both convs + biases."""
    B, T, C, HW = x.shape
    kernel = _make_xconv_kernel(H, W, C, T)
    est = (2 * 4 * (T * C * HW + 9 * HW + T * 3 * C * HW)
           + 2 * 2 * (3 * C * 9 * C) + 4 * 9 * C * HW)
    grid_spec = pltpu.PrefetchScalarGridSpec(
        num_scalar_prefetch=0,
        grid=(B,),
        in_specs=[
            pl.BlockSpec((1, T, C, HW), lambda b: (b, 0, 0, 0)),   # all frames of x
            pl.BlockSpec((9, HW), lambda b: (0, 0)),               # border masks
            pl.BlockSpec((3 * C, 9 * C), lambda b: (0, 0)),        # x weights (fused)
            pl.BlockSpec((3 * C, 1), lambda b: (0, 0)),            # biases
        ],
        out_specs=pl.BlockSpec((1, T, 3 * C, HW), lambda b: (b, 0, 0, 0)),
        scratch_shapes=[pltpu.VMEM((9 * C, HW), jnp.float32)],     # tap-stacked operand
    )
    return pl.pallas_call(
        kernel,
        out_shape=jax.ShapeDtypeStruct((B, T, 3 * C, HW), jnp.float32),
        grid_spec=grid_spec,
        compiler_params=_compiler_params(("parallel",), est),
    )(x, masks, wx, bx)


def _convgru_pallas(gx, r0, masks, wh, wrh, H, W, t_block):
    """gx: (B, T, 3C, HW) precomputed x pre-activations; r0: (B, C, HW)."""
    B, T, C3, HW = gx.shape
    C = C3 // 3
    assert T % t_block == 0
    kernel = _make_convgru_kernel(H, W, C, t_block)
    est = (2 * 4 * (t_block * 3 * C * HW + C * HW + 9 * HW + t_block * C * HW)
           + 2 * 2 * (2 * C * 9 * C + C * 9 * C)
           + 4 * (C * HW + 9 * C * HW))
    grid_spec = pltpu.PrefetchScalarGridSpec(
        num_scalar_prefetch=0,
        grid=(B, T // t_block),                                   # batch parallel, time serial
        in_specs=[
            pl.BlockSpec((1, t_block, 3 * C, HW), lambda b, t: (b, t, 0, 0)),
            pl.BlockSpec((1, C, HW), lambda b, t: (b, 0, 0)),     # initial h (r)
            pl.BlockSpec((9, HW), lambda b, t: (0, 0)),           # border masks
            pl.BlockSpec((2 * C, 9 * C), lambda b, t: (0, 0)),    # h weights (conv_ih)
            pl.BlockSpec((C, 9 * C), lambda b, t: (0, 0)),        # r*h weights (conv_hh)
        ],
        out_specs=pl.BlockSpec((1, t_block, C, HW), lambda b, t: (b, t, 0, 0)),
        scratch_shapes=[pltpu.VMEM((C, HW), jnp.float32),         # resident h
                        pltpu.VMEM((9 * C, HW), jnp.float32)],    # tap-stacked operand
    )
    return pl.pallas_call(
        kernel,
        out_shape=jax.ShapeDtypeStruct((B, T, C, HW), r0.dtype),
        grid_spec=grid_spec,
        compiler_params=_compiler_params(("parallel", "arbitrary"), est),
    )(gx, r0, masks, wh, wrh)


def bottleneck_block(x, r, params, *, t_block=None):
    """Mirrors BottleneckBlock.forward.

    x: (B, C, H, W) or (B, T, C, H, W) in NCHW; r: (B, C, H, W) or None.
    params: (wih, bih, whh, bhh) with conv weights in HWIO layout.
    Returns (b, r) exactly like the PyTorch module.
    """
    single_frame = (x.ndim == 4)
    if single_frame:
        x = x[:, None]
    B, T, C, H, W = x.shape
    if r is None:
        r = jnp.zeros((B, C, H, W), x.dtype)

    wx, wh, wrh, bx = _prepare_params(*params)
    masks = _border_masks(H, W)

    # Parallel precompute of everything that does not depend on the recurrence.
    gx = _xconv_pallas(x.reshape(B, T, C, H * W), masks, wx, bx, H, W)
    # Serial recurrence with the whole time block inside one grid step.
    o_flat = _convgru_pallas(gx, r.reshape(B, C, H * W), masks, wh, wrh, H, W,
                             t_block=(t_block or T))
    o = o_flat.reshape(B, T, C, H, W)
    h_last = o[:, -1]
    if single_frame:
        return o[:, 0], h_last
    return o, h_last


# ----------------------------- pure-JAX reference -----------------------------
def _ref_convgru_step(x_nhwc, h_nhwc, params):
    wih, bih, whh, bhh = params

    def conv(inp, w, b):
        out = jax.lax.conv_general_dilated(
            inp, w, window_strides=(1, 1), padding=((1, 1), (1, 1)),
            dimension_numbers=("NHWC", "HWIO", "NHWC"),
            precision=jax.lax.Precision.HIGHEST)
        return out + b.reshape(1, 1, 1, -1)

    C = h_nhwc.shape[-1]
    xh = jnp.concatenate([x_nhwc, h_nhwc], axis=-1)
    rz = jax.nn.sigmoid(conv(xh, wih, bih))
    r, z = rz[..., :C], rz[..., C:]
    c = jnp.tanh(conv(jnp.concatenate([x_nhwc, r * h_nhwc], axis=-1), whh, bhh))
    return (1.0 - z) * h_nhwc + z * c


if __name__ == "__main__":
    key = jax.random.PRNGKey(0)
    B, T, C, H, W = 2, 8, 4, 16, 16
    k1, k2, k3, k4, k5 = jax.random.split(key, 5)

    x_seq = jax.random.normal(k1, (B, T, C, H, W), jnp.float32)

    # Deterministic param init (PyTorch Conv2d-style uniform bounds), HWIO layout.
    fan = 2 * C * 3 * 3
    bnd = 1.0 / (fan ** 0.5)
    wih = jax.random.uniform(k2, (3, 3, 2 * C, 2 * C), jnp.float32, -bnd, bnd)
    bih = jax.random.uniform(k3, (2 * C,), jnp.float32, -bnd, bnd)
    whh = jax.random.uniform(k4, (3, 3, 2 * C, C), jnp.float32, -bnd, bnd)
    bhh = jax.random.uniform(k5, (C,), jnp.float32, -bnd, bnd)
    params = (wih, bih, whh, bhh)

    # 5-D time-series path: parallel x-precompute + one serial recurrence call.
    b_out, r_out = bottleneck_block(x_seq, None, params)
    jax.block_until_ready((b_out, r_out))

    # Reference: iterate the single-frame ConvGRU in pure JAX (NHWC, f32 HIGHEST).
    h = jnp.zeros((B, H, W, C), jnp.float32)
    ref_frames = []
    for t in range(T):
        xt = jnp.transpose(x_seq[:, t], (0, 2, 3, 1))
        h = _ref_convgru_step(xt, h, params)
        ref_frames.append(jnp.transpose(h, (0, 3, 1, 2)))
    ref_o = jnp.stack(ref_frames, axis=1)

    # Tolerance accounts for intentional bf16 MXU operands (f32 accumulation).
    assert jnp.allclose(b_out, ref_o, atol=2e-2, rtol=2e-2)
    assert jnp.allclose(r_out, ref_o[:, -1], atol=2e-2, rtol=2e-2)

    # 4-D single-frame path.
    b1, r1 = bottleneck_block(x_seq[:, 0], None, params)
    jax.block_until_ready((b1, r1))
    assert jnp.allclose(b1, ref_o[:, 0], atol=2e-2, rtol=2e-2)
    assert jnp.allclose(r1, ref_o[:, 0], atol=2e-2, rtol=2e-2)

    print("KERNEL_OK")
</pallas_src>

<mosaic_0001>
module attributes {stable_mosaic.version = 11 : i64} {
  func.func @kernel(%arg0: i32, %arg1: memref<1x8x4x256xf32, #tpu.memory_space<vmem>>, %arg2: memref<9x256xf32, #tpu.memory_space<vmem>>, %arg3: memref<12x36xbf16, #tpu.memory_space<vmem>>, %arg4: memref<12x1xf32, #tpu.memory_space<vmem>>, %arg5: memref<1x8x12x256xf32, #tpu.memory_space<vmem>>, %arg6: memref<36x256xf32, #tpu.memory_space<vmem>>) attributes {dimension_semantics = [#tpu.dimension_semantics<parallel>], iteration_bounds = array<i64: 2>, scalar_prefetch = 0 : i64, scratch_operands = 1 : i64, tpu.core_type = #tpu.core_type<tc>, window_params = [{transform_indices = @transform_0, window_bounds = array<i64: 1, 8, 4, 256>}, {pipeline_mode = #tpu.pipeline_mode<synchronous>, transform_indices = @transform_1, window_bounds = array<i64: 9, 256>}, {pipeline_mode = #tpu.pipeline_mode<synchronous>, transform_indices = @transform_2, window_bounds = array<i64: 12, 36>}, {pipeline_mode = #tpu.pipeline_mode<synchronous>, transform_indices = @transform_3, window_bounds = array<i64: 12, 1>}, {transform_indices = @transform_4, window_bounds = array<i64: 1, 8, 12, 256>}]} {
    %c0 = arith.constant 0 : index
    %c0_0 = arith.constant 0 : index
    %0 = vector.load %arg2[%c0, %c0_0] : memref<9x256xf32, #tpu.memory_space<vmem>>, vector<9x256xf32>
    %c0_1 = arith.constant 0 : index
    %c0_2 = arith.constant 0 : index
    %1 = vector.load %arg3[%c0_1, %c0_2] : memref<12x36xbf16, #tpu.memory_space<vmem>>, vector<12x36xbf16>
    %c0_3 = arith.constant 0 : index
    %c0_4 = arith.constant 0 : index
    %2 = vector.load %arg4[%c0_3, %c0_4] : memref<12x1xf32, #tpu.memory_space<vmem>>, vector<12x1xf32>
    %3 = vector.shape_cast %2 : vector<12x1xf32> to vector<12x1xf32>
    %4 = vector.broadcast %3 : vector<12x1xf32> to vector<12x256xf32>
    %c0_i32 = arith.constant 0 : i32
    %c8_i32 = arith.constant 8 : i32
    %5 = arith.addi %c0_i32, %c8_i32 : i32
    %c1_i32 = arith.constant 1 : i32
    scf.for %arg7 = %c0_i32 to %5 step %c1_i32  : i32 {
      %c0_6 = arith.constant 0 : index
      %6 = arith.index_cast %arg7 : i32 to index
      %c0_7 = arith.constant 0 : index
      %c0_8 = arith.constant 0 : index
      %7 = vector.load %arg1[%c0_6, %6, %c0_7, %c0_8] : memref<1x8x4x256xf32, #tpu.memory_space<vmem>>, vector<1x1x4x256xf32>
      %8 = vector.shape_cast %7 : vector<1x1x4x256xf32> to vector<4x256xf32>
      %c17_i32 = arith.constant 17 : i32
      %9 = tpu.dynamic_rotate %8 by %c17_i32 dim 1 : vector<4x256xf32>, i32 -> vector<4x256xf32>
      %10 = vector.extract_strided_slice %0 {offsets = [0, 0], sizes = [1, 256], strides = [1, 1]} : vector<9x256xf32> to vector<1x256xf32>
      %11 = vector.broadcast %10 : vector<1x256xf32> to vector<4x256xf32>
      %12 = arith.mulf %9, %11 : vector<4x256xf32>
      %c0_9 = arith.constant 0 : index
      %c0_10 = arith.constant 0 : index
      %13 = vector.load %arg6[%c0_9, %c0_10] : memref<36x256xf32, #tpu.memory_space<vmem>>, vector<4x256xf32>
      tpu.vector_store %arg6[%c0_9, %c0_10], %12 {strides = array<i32>} : memref<36x256xf32, #tpu.memory_space<vmem>>, vector<4x256xf32>,
      %c16_i32 = arith.constant 16 : i32
      %14 = tpu.dynamic_rotate %8 by %c16_i32 dim 1 : vector<4x256xf32>, i32 -> vector<4x256xf32>
      %15 = vector.extract_strided_slice %0 {offsets = [1, 0], sizes = [1, 256], strides = [1, 1]} : vector<9x256xf32> to vector<1x256xf32>
      %16 = vector.broadcast %15 : vector<1x256xf32> to vector<4x256xf32>
      %17 = arith.mulf %14, %16 : vector<4x256xf32>
      %c4 = arith.constant 4 : index
      %c0_11 = arith.constant 0 : index
      %18 = vector.load %arg6[%c4, %c0_11] : memref<36x256xf32, #tpu.memory_space<vmem>>, vector<4x256xf32>
      tpu.vector_store %arg6[%c4, %c0_11], %17 {strides = array<i32>} : memref<36x256xf32, #tpu.memory_space<vmem>>, vector<4x256xf32>,
      %c15_i32 = arith.constant 15 : i32
      %19 = tpu.dynamic_rotate %8 by %c15_i32 dim 1 : vector<4x256xf32>, i32 -> vector<4x256xf32>
      %20 = vector.extract_strided_slice %0 {offsets = [2, 0], sizes = [1, 256], strides = [1, 1]} : vector<9x256xf32> to vector<1x256xf32>
      %21 = vector.broadcast %20 : vector<1x256xf32> to vector<4x256xf32>
      %22 = arith.mulf %19, %21 : vector<4x256xf32>
      %c8 = arith.constant 8 : index
      %c0_12 = arith.constant 0 : index
      %23 = vector.load %arg6[%c8, %c0_12] : memref<36x256xf32, #tpu.memory_space<vmem>>, vector<4x256xf32>
      tpu.vector_store %arg6[%c8, %c0_12], %22 {strides = array<i32>} : memref<36x256xf32, #tpu.memory_space<vmem>>, vector<4x256xf32>,
      %c1_i32_13 = arith.constant 1 : i32
      %24 = tpu.dynamic_rotate %8 by %c1_i32_13 dim 1 : vector<4x256xf32>, i32 -> vector<4x256xf32>
      %25 = vector.extract_strided_slice %0 {offsets = [3, 0], sizes = [1, 256], strides = [1, 1]} : vector<9x256xf32> to vector<1x256xf32>
      %26 = vector.broadcast %25 : vector<1x256xf32> to vector<4x256xf32>
      %27 = arith.mulf %24, %26 : vector<4x256xf32>
      %c12 = arith.constant 12 : index
      %c0_14 = arith.constant 0 : index
      %28 = vector.load %arg6[%c12, %c0_14] : memref<36x256xf32, #tpu.memory_space<vmem>>, vector<4x256xf32>
      tpu.vector_store %arg6[%c12, %c0_14], %27 {strides = array<i32>} : memref<36x256xf32, #tpu.memory_space<vmem>>, vector<4x256xf32>,
      %c16 = arith.constant 16 : index
      %c0_15 = arith.constant 0 : index
      %29 = vector.load %arg6[%c16, %c0_15] : memref<36x256xf32, #tpu.memory_space<vmem>>, vector<4x256xf32>
      tpu.vector_store %arg6[%c16, %c0_15], %8 {strides = array<i32>} : memref<36x256xf32, #tpu.memory_space<vmem>>, vector<4x256xf32>,
      %c255_i32 = arith.constant 255 : i32
      %30 = tpu.dynamic_rotate %8 by %c255_i32 dim 1 : vector<4x256xf32>, i32 -> vector<4x256xf32>
      %31 = vector.extract_strided_slice %0 {offsets = [5, 0], sizes = [1, 256], strides = [1, 1]} : vector<9x256xf32> to vector<1x256xf32>
      %32 = vector.broadcast %31 : vector<1x256xf32> to vector<4x256xf32>
      %33 = arith.mulf %30, %32 : vector<4x256xf32>
      %c20 = arith.constant 20 : index
      %c0_16 = arith.constant 0 : index
      %34 = vector.load %arg6[%c20, %c0_16] : memref<36x256xf32, #tpu.memory_space<vmem>>, vector<4x256xf32>
      tpu.vector_store %arg6[%c20, %c0_16], %33 {strides = array<i32>} : memref<36x256xf32, #tpu.memory_space<vmem>>, vector<4x256xf32>,
      %c241_i32 = arith.constant 241 : i32
      %35 = tpu.dynamic_rotate %8 by %c241_i32 dim 1 : vector<4x256xf32>, i32 -> vector<4x256xf32>
      %36 = vector.extract_strided_slice %0 {offsets = [6, 0], sizes = [1, 256], strides = [1, 1]} : vector<9x256xf32> to vector<1x256xf32>
      %37 = vector.broadcast %36 : vector<1x256xf32> to vector<4x256xf32>
      %38 = arith.mulf %35, %37 : vector<4x256xf32>
      %c24 = arith.constant 24 : index
      %c0_17 = arith.constant 0 : index
      %39 = vector.load %arg6[%c24, %c0_17] : memref<36x256xf32, #tpu.memory_space<vmem>>, vector<4x256xf32>
      tpu.vector_store %arg6[%c24, %c0_17], %38 {strides = array<i32>} : memref<36x256xf32, #tpu.memory_space<vmem>>, vector<4x256xf32>,
      %c240_i32 = arith.constant 240 : i32
      %40 = tpu.dynamic_rotate %8 by %c240_i32 dim 1 : vector<4x256xf32>, i32 -> vector<4x256xf32>
      %41 = vector.extract_strided_slice %0 {offsets = [7, 0], sizes = [1, 256], strides = [1, 1]} : vector<9x256xf32> to vector<1x256xf32>
      %42 = vector.broadcast %41 : vector<1x256xf32> to vector<4x256xf32>
      %43 = arith.mulf %40, %42 : vector<4x256xf32>
      %c28 = arith.constant 28 : index
      %c0_18 = arith.constant 0 : index
      %44 = vector.load %arg6[%c28, %c0_18] : memref<36x256xf32, #tpu.memory_space<vmem>>, vector<4x256xf32>
      tpu.vector_store %arg6[%c28, %c0_18], %43 {strides = array<i32>} : memref<36x256xf32, #tpu.memory_space<vmem>>, vector<4x256xf32>,
      %c239_i32 = arith.constant 239 : i32
      %45 = tpu.dynamic_rotate %8 by %c239_i32 dim 1 : vector<4x256xf32>, i32 -> vector<4x256xf32>
      %46 = vector.extract_strided_slice %0 {offsets = [8, 0], sizes = [1, 256], strides = [1, 1]} : vector<9x256xf32> to vector<1x256xf32>
      %47 = vector.broadcast %46 : vector<1x256xf32> to vector<4x256xf32>
      %48 = arith.mulf %45, %47 : vector<4x256xf32>
      %c32 = arith.constant 32 : index
      %c0_19 = arith.constant 0 : index
      %49 = vector.load %arg6[%c32, %c0_19] : memref<36x256xf32, #tpu.memory_space<vmem>>, vector<4x256xf32>
      tpu.vector_store %arg6[%c32, %c0_19], %48 {strides = array<i32>} : memref<36x256xf32, #tpu.memory_space<vmem>>, vector<4x256xf32>,
      %c0_20 = arith.constant 0 : index
      %c0_21 = arith.constant 0 : index
      %50 = vector.load %arg6[%c0_20, %c0_21] : memref<36x256xf32, #tpu.memory_space<vmem>>, vector<36x256xf32>
      %51 = arith.truncf %50 : vector<36x256xf32> to vector<36x256xbf16>
      %cst = arith.constant dense<0.000000e+00> : vector<12x256xf32>
      %52 = tpu.matmul %1, %51, %cst {dimension_numbers = #tpu.dot_dimension_numbers<[1], [0], [0], [1], [0, 0, 1, 1], [], []>} : vector<12x36xbf16>, vector<36x256xbf16>, vector<12x256xf32> -> vector<12x256xf32>
      %53 = arith.addf %52, %4 : vector<12x256xf32>
      %c0_22 = arith.constant 0 : index
      %54 = arith.index_cast %arg7 : i32 to index
      %c0_23 = arith.constant 0 : index
      %c0_24 = arith.constant 0 : index
      %55 = vector.load %arg5[%c0_22, %54, %c0_23, %c0_24] : memref<1x8x12x256xf32, #tpu.memory_space<vmem>>, vector<1x1x12x256xf32>
      %56 = vector.shape_cast %55 : vector<1x1x12x256xf32> to vector<12x256xf32>
      %57 = vector.shape_cast %53 : vector<12x256xf32> to vector<1x1x12x256xf32>
      tpu.vector_store %arg5[%c0_22, %54, %c0_23, %c0_24], %57 {strides = array<i32>} : memref<1x8x12x256xf32, #tpu.memory_space<vmem>>, vector<1x1x12x256xf32>,
    }
    %c8_i32_5 = arith.constant 8 : i32
    return
  }
  func.func @transform_0(%arg0: i32) -> (i32, i32, i32, i32) {
    %c0_i32 = arith.constant 0 : i32
    %c0_i32_0 = arith.constant 0 : i32
    %c0_i32_1 = arith.constant 0 : i32
    %c0_i32_2 = arith.constant 0 : i32
    return %arg0, %c0_i32, %c0_i32_0, %c0_i32_1 : i32, i32, i32, i32
  }
  func.func @transform_1(%arg0: i32) -> (i32, i32) {
    %c0_i32 = arith.constant 0 : i32
    %c0_i32_0 = arith.constant 0 : i32
    %c0_i32_1 = arith.constant 0 : i32
    return %c0_i32, %c0_i32_0 : i32, i32
  }
  func.func @transform_2(%arg0: i32) -> (i32, i32) {
    %c0_i32 = arith.constant 0 : i32
    %c0_i32_0 = arith.constant 0 : i32
    %c0_i32_1 = arith.constant 0 : i32
    return %c0_i32, %c0_i32_0 : i32, i32
  }
  func.func @transform_3(%arg0: i32) -> (i32, i32) {
    %c0_i32 = arith.constant 0 : i32
    %c0_i32_0 = arith.constant 0 : i32
    %c0_i32_1 = arith.constant 0 : i32
    return %c0_i32, %c0_i32_0 : i32, i32
  }
  func.func @transform_4(%arg0: i32) -> (i32, i32, i32, i32) {
    %c0_i32 = arith.constant 0 : i32
    %c0_i32_0 = arith.constant 0 : i32
    %c0_i32_1 = arith.constant 0 : i32
    %c0_i32_2 = arith.constant 0 : i32
    return %arg0, %c0_i32, %c0_i32_0, %c0_i32_1 : i32, i32, i32, i32
  }
}

</mosaic_0001>

<llo_original>
// kernel: tpu_custom_call.1
$region0: #{tpu_custom_call.1}
  #allocation0 [shape = 'u32[]', space=smem, size = 0x4, offset = 0x4, fixed_abs, tag = 'smem constant byte address 0x4 - core index']
  #allocation1 [shape = 'u32[72,128]{1,0:T(1,128)}', space=vmem, size = 0x9000, scoped, tag = 'internal scratch']
  #allocation2 [shape = 'f32[36,256]{1,0:T(8,128)}', space=vmem, size = 0xa000, scoped, tag = 'scratch operand']
  %s0 = inlined_call_operand.hbm [shape: f32[2,8,4,256], index: 0, kind: input, shape index: {}]
  %s1 = inlined_call_operand.hbm [shape: f32[9,256], index: 1, kind: input, shape index: {}]
  %s2 = inlined_call_operand.vmem [shape: bf16[12,36], index: 2, kind: input, shape index: {}]
  %s3 = inlined_call_operand.vmem [shape: f32[12,1], index: 3, kind: input, shape index: {}]
  %s4 = inlined_call_operand.vmem [shape: f32[2,8,12,256], index: 4, kind: output, shape index: {}]
  %s5 = sld [smem:[#allocation0]]
  $region64: #{tpu_custom_call.1} parent=0
    _
  %s7 = ssub.s32 1, %s5
  %s8 = scalar_select 0, %s7, %s5
  $region1: #{tpu_custom_call.1} parent=0
    #allocation3 [shape = 'u8[65536]{0}', space=vmem, size = 0x10000, scoped, tag = 'input window, operand 0']
    #allocation4 [shape = 's32[2]{0}', space=sflag, size = 0x8, scoped, tag = 'scoped memory for tpu_custom_call.1']
    #allocation5 [shape = 'u8[16384]{0}', space=vmem, size = 0x4000, scoped, tag = 'input window, operand 1, single buffered']
    #allocation6 [shape = 's32[1]{0}', space=sflag, size = 0x4, scoped, tag = 'scoped memory for tpu_custom_call.1']
    %9 = vsyncpa [#allocation4], 0
    %s10 = scalar_lea.sflag [#allocation4], 1
    %11 = vsyncpa %s10, 0
    %12 = vsyncpa [#allocation6], 0
    loop: start=0, step=1, limit=4
    $region2: #{tpu_custom_call.1} parent=1 // loop_pre_header
      _
    $region3: #{tpu_custom_call.1} parent=1 // loop_header
      %s14 = sphi 0, %s18
      %p15 = scmp.ge.s32.totalorder %s14, 4
      %s24 = sphi 0, %s26
      %s27 = sphi 0, %s24
      %s28 = sphi 0, %s27
      %s44 = sphi 0, %s28
      %s48 = sphi 0, %s48
      %s50 = sphi 0, %s48
      %s51 = sphi 0, %s50
      %s65 = sphi 0, %s51
      %s69 = sphi 0, %s69
      %s71 = sphi 0, %s69
      %s72 = sphi 0, %s71
      %s86 = sphi 0, %s72
      %s90 = sphi 0, %s90
      %s92 = sphi 0, %s90
      %s93 = sphi 0, %s92
      %s107 = sphi 0, %s93
      %s113 = sphi 0, %s115
      %s116 = sphi 0, %s113
      %s117 = sphi 0, %s116
      %s133 = sphi 0, %s117
    $region4: #{tpu_custom_call.1} parent=1 // loop_header_branch
      %17 = sbr.rel (%p15) target = $region8
    $region5: #{tpu_custom_call.1} parent=1 // loop_body
      %s19 = ssub.s32 %s14, 1
      %s20 = ssub.s32 %s14, 2
      %s21 = sadd.s32 %s14, 1
      %s22 = ssub.s32 %s14, %s21
      %p23 = scmp.eq.s32.totalorder %s22, 0
      %s25 = sadd.s32 %s24, 1
      %s26 = scalar_select %p23, %s24, %s25
      %p29 = pneg %p23
      %p30 = scmp.eq.s32.totalorder %s14, 1
      %p31 = por %p29, %p30
      %p32 = scmp.ne.s32.totalorder %s24, %s27
      %p33 = scmp.eq.s32.totalorder %s14, 0
      %p34 = por %p32, %p33
      %p35 = scmp.ne.s32.totalorder %s24, %s27
      %p36 = scmp.eq.s32.totalorder %s19, 1
      %p37 = por %p35, %p36
      %p38 = scmp.ne.s32.totalorder %s27, %s28
      %p39 = scmp.eq.s32.totalorder %s19, 0
      %p40 = por %p38, %p39
      %p41 = scmp.ne.s32.totalorder %s27, %s28
      %p42 = scmp.eq.s32.totalorder %s20, 1
      %p43 = por %p41, %p42
      %p45 = scmp.ne.s32.totalorder %s28, %s44
      %p46 = scmp.eq.s32.totalorder %s20, 0
      %p47 = por %p45, %p46
      %s49 = sadd.s32 %s48, 1
      %p52 = scmp.eq.s32.totalorder %s14, 1
      %p53 = scmp.ne.s32.totalorder %s48, %s50
      %p54 = scmp.eq.s32.totalorder %s14, 0
      %p55 = por %p53, %p54
      %p56 = scmp.ne.s32.totalorder %s48, %s50
      %p57 = scmp.eq.s32.totalorder %s19, 1
      %p58 = por %p56, %p57
      %p59 = scmp.ne.s32.totalorder %s50, %s51
      %p60 = scmp.eq.s32.totalorder %s19, 0
      %p61 = por %p59, %p60
      %p62 = scmp.ne.s32.totalorder %s50, %s51
      %p63 = scmp.eq.s32.totalorder %s20, 1
      %p64 = por %p62, %p63
      %p66 = scmp.ne.s32.totalorder %s51, %s65
      %p67 = scmp.eq.s32.totalorder %s20, 0
      %p68 = por %p66, %p67
      %s70 = sadd.s32 %s69, 1
      %p73 = scmp.eq.s32.totalorder %s14, 1
      %p74 = scmp.ne.s32.totalorder %s69, %s71
      %p75 = scmp.eq.s32.totalorder %s14, 0
      %p76 = por %p74, %p75
      %p77 = scmp.ne.s32.totalorder %s69, %s71
      %p78 = scmp.eq.s32.totalorder %s19, 1
      %p79 = por %p77, %p78
      %p80 = scmp.ne.s32.totalorder %s71, %s72
      %p81 = scmp.eq.s32.totalorder %s19, 0
      %p82 = por %p80, %p81
      %p83 = scmp.ne.s32.totalorder %s71, %s72
      %p84 = scmp.eq.s32.totalorder %s20, 1
      %p85 = por %p83, %p84
      %p87 = scmp.ne.s32.totalorder %s72, %s86
      %p88 = scmp.eq.s32.totalorder %s20, 0
      %p89 = por %p87, %p88
      %s91 = sadd.s32 %s90, 1
      %p94 = scmp.eq.s32.totalorder %s14, 1
      %p95 = scmp.ne.s32.totalorder %s90, %s92
      %p96 = scmp.eq.s32.totalorder %s14, 0
      %p97 = por %p95, %p96
      %p98 = scmp.ne.s32.totalorder %s90, %s92
      %p99 = scmp.eq.s32.totalorder %s19, 1
      %p100 = por %p98, %p99
      %p101 = scmp.ne.s32.totalorder %s92, %s93
      %p102 = scmp.eq.s32.totalorder %s19, 0
      %p103 = por %p101, %p102
      %p104 = scmp.ne.s32.totalorder %s92, %s93
      %p105 = scmp.eq.s32.totalorder %s20, 1
      %p106 = por %p104, %p105
      %p108 = scmp.ne.s32.totalorder %s93, %s107
      %p109 = scmp.eq.s32.totalorder %s20, 0
      %p110 = por %p108, %p109
      %s111 = ssub.s32 %s14, %s21
      %p112 = scmp.eq.s32.totalorder %s111, 0
      %s114 = sadd.s32 %s113, 1
      %s115 = scalar_select %p112, %s113, %s114
      %p118 = pneg %p112
      %p119 = scmp.eq.s32.totalorder %s14, 1
      %p120 = por %p118, %p119
      %p121 = scmp.ne.s32.totalorder %s113, %s116
      %p122 = scmp.eq.s32.totalorder %s14, 0
      %p123 = por %p121, %p122
      %p124 = scmp.ne.s32.totalorder %s113, %s116
      %p125 = scmp.eq.s32.totalorder %s19, 1
      %p126 = por %p124, %p125
      %p127 = scmp.ne.s32.totalorder %s116, %s117
      %p128 = scmp.eq.s32.totalorder %s19, 0
      %p129 = por %p127, %p128
      %p130 = scmp.ne.s32.totalorder %s116, %s117
      %p131 = scmp.eq.s32.totalorder %s20, 1
      %p132 = por %p130, %p131
      %p134 = scmp.ne.s32.totalorder %s117, %s133
      %p135 = scmp.eq.s32.totalorder %s20, 0
      %p136 = por %p134, %p135
      %p137 = scmp.le.s32.totalorder 1, %s14
      %p138 = scmp.lt.s32.totalorder %s14, 3
      %p139 = pnand %p137, %p138
      %p140 = pneg %p139
      // Predicated region
      $region9: #{tpu_custom_call.1} parent=5 // pred_check
        _
      $region10: #{tpu_custom_call.1} parent=5 // pred_check_branch
        %142 = sbr.rel (%p139) target = $region12
      $region11: #{tpu_custom_call.1} parent=5 // pred_region
        %s143 = ssub.s32 %s14, 1
        // Predicated region
        $region13: #{tpu_custom_call.1} parent=11 // pred_check
          %p144 = pneg %p61
        $region14: #{tpu_custom_call.1} parent=11 // pred_check_branch
          %146 = sbr.rel (%p144) target = $region16
        $region15: #{tpu_custom_call.1} parent=11 // pred_region
          %148 = vsyncadd [#allocation6], 0
          %s149 = sshll.u32 %s1, 4
          %s150 = int_to_ptr.hbm [resolvable:$true] %s149
          %s151 = sshll.u32 [#allocation5], 4
          %s152 = int_to_ptr.vmem [resolvable:$true] %s151
          %157 = dma.hbm_to_vmem [thread:$0]  %s150, 512, %s152, [#allocation6], 256, 256, 16
        $region16: #{tpu_custom_call.1} parent=11 // pred_fallthru
          _
        // Predicated region
        $region17: #{tpu_custom_call.1} parent=11 // pred_check
          %p158 = pneg %p82
        $region18: #{tpu_custom_call.1} parent=11 // pred_check_branch
          %160 = sbr.rel (%p158) target = $region20
        $region19: #{tpu_custom_call.1} parent=11 // pred_region
          _
        $region20: #{tpu_custom_call.1} parent=11 // pred_fallthru
          _
        // Predicated region
        $region21: #{tpu_custom_call.1} parent=11 // pred_check
          %p161 = pneg %p103
        $region22: #{tpu_custom_call.1} parent=11 // pred_check_branch
          %163 = sbr.rel (%p161) target = $region24
        $region23: #{tpu_custom_call.1} parent=11 // pred_region
          _
        $region24: #{tpu_custom_call.1} parent=11 // pred_fallthru
          _
      $region12: #{tpu_custom_call.1} parent=5 // pred_fallthru
        _
      %p164 = scmp.lt.s32.totalorder %s14, 2
      // Predicated region
      $region25: #{tpu_custom_call.1} parent=5 // pred_check
        %p165 = pneg %p164
      $region26: #{tpu_custom_call.1} parent=5 // pred_check_branch
        %167 = sbr.rel (%p165) target = $region28
      $region27: #{tpu_custom_call.1} parent=5 // pred_region
        // Predicated region
        $region29: #{tpu_custom_call.1} parent=27 // pred_check
          %p168 = pneg %p34
        $region30: #{tpu_custom_call.1} parent=27 // pred_check_branch
          %170 = sbr.rel (%p168) target = $region32
        $region31: #{tpu_custom_call.1} parent=27 // pred_region
          %s171 = sand.u32 %s24, 1
          %s172 = scalar_lea.sflag [#allocation4], %s171
          %s173 = sand.u32 %s24, 1
          %s174 = smul.addr %s173, 64
          %s175 = scalar_lea.vmem [#allocation3], %s174
          %177 = vsyncadd %s172, 0
          %s178 = smul.addr %s14, 16
          %s179 = smul.addr %s178, 4
          %s180 = scalar_lea.hbm %s0, %s179
          %s181 = sshll.u32 %s180, 4
          %s182 = int_to_ptr.hbm [resolvable:$true] %s181
          %s183 = sshll.u32 %s175, 4
          %s184 = int_to_ptr.vmem [resolvable:$true] %s183
          %189 = dma.hbm_to_vmem [thread:$0]  %s182, 1024, %s184, %s172, 128, 128, 8
        $region32: #{tpu_custom_call.1} parent=27 // pred_fallthru
          _
      $region28: #{tpu_custom_call.1} parent=5 // pred_fallthru
        _
      %p190 = scmp.le.s32.totalorder 1, %s14
      %p191 = scmp.lt.s32.totalorder %s14, 3
      %p192 = pnand %p190, %p191
      %p193 = pneg %p192
      // Predicated region
      $region33: #{tpu_custom_call.1} parent=5 // pred_check
        _
      $region34: #{tpu_custom_call.1} parent=5 // pred_check_branch
        %195 = sbr.rel (%p192) target = $region36
      $region35: #{tpu_custom_call.1} parent=5 // pred_region
        %s196 = ssub.s32 %s14, 1
        %s197 = sand.u32 %s27, 1
        %s198 = scalar_lea.sflag [#allocation4], %s197
        %s199 = sand.u32 %s27, 1
        %s200 = smul.addr %s199, 64
        %s201 = scalar_lea.vmem [#allocation3], %s200
        // Predicated region
        $region37: #{tpu_custom_call.1} parent=35 // pred_check
          %p202 = pneg %p40
        $region38: #{tpu_custom_call.1} parent=35 // pred_check_branch
          %204 = sbr.rel (%p202) target = $region40
        $region39: #{tpu_custom_call.1} parent=35 // pred_region
          %206 = dma.done %s198, 1024
        $region40: #{tpu_custom_call.1} parent=35 // pred_fallthru
          _
        // Predicated region
        $region41: #{tpu_custom_call.1} parent=35 // pred_check
          %p207 = pneg %p61
        $region42: #{tpu_custom_call.1} parent=35 // pred_check_branch
          %209 = sbr.rel (%p207) target = $region44
        $region43: #{tpu_custom_call.1} parent=35 // pred_region
          %211 = dma.done [#allocation6], 512
        $region44: #{tpu_custom_call.1} parent=35 // pred_fallthru
          _
        %s212 = sand.u32 %s27, 1
        %s213 = scalar_lea.sflag [#allocation4], %s212
        %s214 = sand.u32 %s27, 1
        %s215 = smul.addr %s214, 64
        %s216 = scalar_lea.vmem [#allocation3], %s215
        %p217 = pneg %p40
        %p218 = pneg %p37
        %p219 = pneg %p61
        %p220 = pneg %p58
        %p221 = pneg %p82
        %p222 = pneg %p79
        %p223 = pneg %p103
        %p224 = pneg %p100
        %p225 = pneg %p129
        %p226 = pneg %p126
        %p227 = scmp.lt.s32.totalorder %s19, 1
        %s228 = scalar_select %p227, %s19, 1
        %s229 = smul.addr %s228, 32
        %s230 = smul.addr %s229, 8
        %s231 = scalar_lea.vmem %s4, %s230
        %p232 = scmp.lt.s32.totalorder %s19, 1
        %s233 = scalar_select %p232, %s19, 1
        %s234 = smul.addr %s233, 32
        %s235 = smul.addr %s234, 8
        %s236 = scalar_lea.vmem %s4, %s235
        %v238 = vld [vmem:[#allocation5] sm:$0xff]
        %v239 = vld [vmem:[#allocation5 + $0x8] sm:$0xff]
        %v240 = vld [vmem:[#allocation5 + $0x10] sm:$0x1]
        %v241 = vld [vmem:[#allocation5 + $0x18] sm:$0x1]
        %v242 = vld [vmem:[%s2] sm:$0xf]
        %v243 = vld [vmem:[%s2 + $0x4] sm:$0x3]
        %v244 = vld [vmem:[%s3] sm:$0xff]
        %v245 = vld [vmem:[%s3 + $0x8] sm:$0xf]
        %247 = vset.pattern.permute.xlu0 0
        %248 = vperm.xlu0 %247, %v244
        %v249 = vpop.permute.xlu0 %248
        %252 = vset.pattern.permute.xlu0 0
        %253 = vperm.xlu0 %252, %v245
        %v254 = vpop.permute.xlu0 %253
        loop: start=0, step=1, limit=8
        $region45: #{tpu_custom_call.1} parent=35 // loop_pre_header
          _
        $region46: #{tpu_custom_call.1} parent=35 // loop_header
          %s257 = sphi 0, %s261
          %p258 = scmp.ge.s32.totalorder %s257, 8
        $region47: #{tpu_custom_call.1} parent=35 // loop_header_branch
          %260 = sbr.rel (%p258) target = $region51
        $region48: #{tpu_custom_call.1} parent=35 // loop_body
          %s262 = smul.u32 %s257, 2
          %s263 = smul.addr %s262, 4
          %s264 = scalar_lea.vmem %s201, %s263 [#allocation3]
          %v265 = vld [vmem:[%s264] sm:$0xff]
          %267 = vst [vmem:[#allocation1] ss:$2 sm:$0xff] %v265
          %v268 = vld.sshfl [vmem:[#allocation1] sm:$0xff pattern:$0x75316420]
          %v269 = vld.sshfl [vmem:[#allocation1 + $0x8] sm:$0xff pattern:$0x75316420]
          %272 = vrot.lane.b32.xlu0 %v268, 17
          %v273 = vpop.permute.xlu0 %272
          %274 = vrot.lane.b32.xlu0 %v269, 17
          %v275 = vpop.permute.xlu0 %274
          %v276 = vlaneseq
          %v277 = vand.u32 %v276, 127
          %vm278 = vcmp.lt.s32.totalorder %v277, 17
          %v279 = vsel %vm278, %v273, %v275
          %v280 = vsel %vm278, %v275, %v273
          %v281 = vperm.slane %v238, 0
          %v282 = vperm.slane %v239, 0
          %v283 = vmul.f32 %v280, %v281
          %v284 = vmul.f32 %v279, %v282
          %285 = vst [vmem:[#allocation2] sm:$0xf] %v283
          %286 = vst [vmem:[#allocation2 + $0x8] sm:$0xf] %v284
          %287 = vst [vmem:[#allocation1] ss:$2 sm:$0xff] %v265
          %v288 = vld.sshfl [vmem:[#allocation1] sm:$0xff pattern:$0x75316420]
          %v289 = vld.sshfl [vmem:[#allocation1 + $0x8] sm:$0xff pattern:$0x75316420]
          %292 = vrot.lane.b32.xlu0 %v288, 16
          %v293 = vpop.permute.xlu0 %292
          %294 = vrot.lane.b32.xlu0 %v289, 16
          %v295 = vpop.permute.xlu0 %294
          %vm296 = vcmp.lt.s32.totalorder %v277, 16
          %v297 = vsel %vm296, %v293, %v295
          %v298 = vsel %vm296, %v295, %v293
          %v299 = vperm.slane %v238, 1
          %v300 = vperm.slane %v239, 1
          %v301 = vmul.f32 %v298, %v299
          %v302 = vmul.f32 %v297, %v300
          %v305 = vrot.slane %v301, 4
          %v306 = vrot.slane %v302, 4
          %309 = vst [vmem:[#allocation2] sm:$0xf0] %v305
          %310 = vst [vmem:[#allocation2 + $0x8] sm:$0xf0] %v306
          %311 = vst [vmem:[#allocation1] ss:$2 sm:$0xff] %v265
          %v312 = vld.sshfl [vmem:[#allocation1] sm:$0xff pattern:$0x75316420]
          %v313 = vld.sshfl [vmem:[#allocation1 + $0x8] sm:$0xff pattern:$0x75316420]
          %316 = vrot.lane.b32.xlu0 %v312, 15
          %v317 = vpop.permute.xlu0 %316
          %318 = vrot.lane.b32.xlu0 %v313, 15
          %v319 = vpop.permute.xlu0 %318
          %vm320 = vcmp.lt.s32.totalorder %v277, 15
          %v321 = vsel %vm320, %v317, %v319
          %v322 = vsel %vm320, %v319, %v317
          %v323 = vperm.slane %v238, 2
          %v324 = vperm.slane %v239, 2
          %v325 = vmul.f32 %v322, %v323
          %v326 = vmul.f32 %v321, %v324
          %327 = vst [vmem:[#allocation2 + $0x10] sm:$0xf] %v325
          %328 = vst [vmem:[#allocation2 + $0x18] sm:$0xf] %v326
          %329 = vst [vmem:[#allocation1] ss:$2 sm:$0xff] %v265
          %v330 = vld.sshfl [vmem:[#allocation1] sm:$0xff pattern:$0x75316420]
          %v331 = vld.sshfl [vmem:[#allocation1 + $0x8] sm:$0xff pattern:$0x75316420]
          %334 = vrot.lane.b32.xlu0 %v330, 1
          %v335 = vpop.permute.xlu0 %334
          %336 = vrot.lane.b32.xlu0 %v331, 1
          %v337 = vpop.permute.xlu0 %336
          %vm338 = vcmp.lt.s32.totalorder %v277, 1
          %v339 = vsel %vm338, %v335, %v337
          %v340 = vsel %vm338, %v337, %v335
          %v341 = vperm.slane %v238, 3
          %v342 = vperm.slane %v239, 3
          %v343 = vmul.f32 %v340, %v341
          %v344 = vmul.f32 %v339, %v342
          %v347 = vrot.slane %v343, 4
          %v348 = vrot.slane %v344, 4
          %351 = vst [vmem:[#allocation2 + $0x10] sm:$0xf0] %v347
          %352 = vst [vmem:[#allocation2 + $0x18] sm:$0xf0] %v348
          %353 = vst [vmem:[#allocation1] ss:$2 sm:$0xff] %v265
          %v354 = vld.sshfl [vmem:[#allocation1] sm:$0xff pattern:$0x75316420]
          %v355 = vld.sshfl [vmem:[#allocation1 + $0x8] sm:$0xff pattern:$0x75316420]
          %358 = vst [vmem:[#allocation2 + $0x20] sm:$0xf] %v354
          %359 = vst [vmem:[#allocation2 + $0x28] sm:$0xf] %v355
          %360 = vst [vmem:[#allocation1] ss:$2 sm:$0xff] %v265
          %v361 = vld.sshfl [vmem:[#allocation1] sm:$0xff pattern:$0x75316420]
          %v362 = vld.sshfl [vmem:[#allocation1 + $0x8] sm:$0xff pattern:$0x75316420]
          %365 = vrot.lane.b32.xlu0 %v361, 127
          %v366 = vpop.permute.xlu0 %365
          %367 = vrot.lane.b32.xlu0 %v362, 127
          %v368 = vpop.permute.xlu0 %367
          %vm369 = vcmp.lt.s32.totalorder %v277, 127
          %v370 = vsel %vm369, %v366, %v368
          %v371 = vsel %vm369, %v368, %v366
          %v372 = vperm.slane %v238, 5
          %v373 = vperm.slane %v239, 5
          %v374 = vmul.f32 %v370, %v372
          %v375 = vmul.f32 %v371, %v373
          %v378 = vrot.slane %v374, 4
          %v379 = vrot.slane %v375, 4
          %382 = vst [vmem:[#allocation2 + $0x20] sm:$0xf0] %v378
          %383 = vst [vmem:[#allocation2 + $0x28] sm:$0xf0] %v379
          %384 = vst [vmem:[#allocation1] ss:$2 sm:$0xff] %v265
          %v385 = vld.sshfl [vmem:[#allocation1] sm:$0xff pattern:$0x75316420]
          %v386 = vld.sshfl [vmem:[#allocation1 + $0x8] sm:$0xff pattern:$0x75316420]
          %389 = vrot.lane.b32.xlu0 %v385, 113
          %v390 = vpop.permute.xlu0 %389
          %391 = vrot.lane.b32.xlu0 %v386, 113
          %v392 = vpop.permute.xlu0 %391
          %vm393 = vcmp.lt.s32.totalorder %v277, 113
          %v394 = vsel %vm393, %v390, %v392
          %v395 = vsel %vm393, %v392, %v390
          %v396 = vperm.slane %v238, 6
          %v397 = vperm.slane %v239, 6
          %v398 = vmul.f32 %v394, %v396
          %v399 = vmul.f32 %v395, %v397
          %400 = vst [vmem:[#allocation2 + $0x30] sm:$0xf] %v398
          %401 = vst [vmem:[#allocation2 + $0x38] sm:$0xf] %v399
          %402 = vst [vmem:[#allocation1] ss:$2 sm:$0xff] %v265
          %v403 = vld.sshfl [vmem:[#allocation1] sm:$0xff pattern:$0x75316420]
          %v404 = vld.sshfl [vmem:[#allocation1 + $0x8] sm:$0xff pattern:$0x75316420]
          %407 = vrot.lane.b32.xlu0 %v403, 112
          %v408 = vpop.permute.xlu0 %407
          %409 = vrot.lane.b32.xlu0 %v404, 112
          %v410 = vpop.permute.xlu0 %409
          %vm411 = vcmp.lt.s32.totalorder %v277, 112
          %v412 = vsel %vm411, %v408, %v410
          %v413 = vsel %vm411, %v410, %v408
          %v414 = vperm.slane %v238, 7
          %v415 = vperm.slane %v239, 7
          %v416 = vmul.f32 %v412, %v414
          %v417 = vmul.f32 %v413, %v415
          %v420 = vrot.slane %v416, 4
          %v421 = vrot.slane %v417, 4
          %424 = vst [vmem:[#allocation2 + $0x30] sm:$0xf0] %v420
          %425 = vst [vmem:[#allocation2 + $0x38] sm:$0xf0] %v421
          %426 = vst [vmem:[#allocation1] ss:$2 sm:$0xff] %v265
          %v427 = vld.sshfl [vmem:[#allocation1] sm:$0xff pattern:$0x75316420]
          %v428 = vld.sshfl [vmem:[#allocation1 + $0x8] sm:$0xff pattern:$0x75316420]
          %431 = vrot.lane.b32.xlu0 %v427, 111
          %v432 = vpop.permute.xlu0 %431
          %433 = vrot.lane.b32.xlu0 %v428, 111
          %v434 = vpop.permute.xlu0 %433
          %vm435 = vcmp.lt.s32.totalorder %v277, 111
          %v436 = vsel %vm435, %v432, %v434
          %v437 = vsel %vm435, %v434, %v432
          %v438 = vperm.slane %v240, 0
          %v439 = vperm.slane %v241, 0
          %v440 = vmul.f32 %v436, %v438
          %v441 = vmul.f32 %v437, %v439
          %442 = vst [vmem:[#allocation2 + $0x40] sm:$0xf] %v440
          %443 = vst [vmem:[#allocation2 + $0x48] sm:$0xf] %v441
          %v444 = vld [vmem:[#allocation2] sm:$0xff]
          %v445 = vld [vmem:[#allocation2 + $0x8] sm:$0xff]
          %v446 = vld [vmem:[#allocation2 + $0x10] sm:$0xff]
          %v447 = vld [vmem:[#allocation2 + $0x18] sm:$0xff]
          %v448 = vld [vmem:[#allocation2 + $0x20] sm:$0xff]
          %v449 = vld [vmem:[#allocation2 + $0x28] sm:$0xff]
          %v450 = vld [vmem:[#allocation2 + $0x30] sm:$0xff]
          %v451 = vld [vmem:[#allocation2 + $0x38] sm:$0xff]
          %v452 = vld [vmem:[#allocation2 + $0x40] sm:$0xf]
          %v453 = vld [vmem:[#allocation2 + $0x48] sm:$0xf]
          %v454 = vpack.c.bf16 %v446, %v444
          %v455 = vpack.c.bf16 %v447, %v445
          %v456 = vpack.c.bf16 %v450, %v448
          %v457 = vpack.c.bf16 %v451, %v449
          %v458 = vpack.c.bf16 %v452, %v452
          %v459 = vpack.c.bf16 %v453, %v453
          %v462 = vunpack.c.l.b16 %v242
          %v463 = vunpack.c.l.b16 %v243
          %v464 = vpack.c.b16 %v463, %v462
          %vm465 = vcmask 293888
          %v467 = vsel %vm465, %v464, 0
          %vm469 = vcmask 1041408
          %v471 = vsel %vm469, %v458, 0
          %v474 = vsel %vm469, %v459, 0
          %476 = vmatpush.bf16.msra.mxu0 0
          %477 = vmatpush.bf16.msra.mxu0 0
          %478 = vmatpush.bf16.msra.mxu0 0
          %479 = vmatpush.bf16.msra.mxu0 0
          %480 = vmatpush.bf16.msra.mxu0 0
          %481 = vmatpush.bf16.msra.mxu0 %v471
          %482 = vmatpush.bf16.msra.mxu0 %v456
          %483 = vmatpush.bf16.msra.mxu0 %v454
          %484 = vmatmul.bf16.gmra.mxu0 %v467
          %v485 = vpop.f32.mrf.mxu0
          %v486 = vadd.f32 %v249, %v485
          %v487 = vpop.f32.mrf.mxu0
          %v488 = vadd.f32 %v254, %v487
          %489 = vdwg.mxu0
          %490 = vmatpush.bf16.msra.mxu0 0
          %491 = vmatpush.bf16.msra.mxu0 0
          %492 = vmatpush.bf16.msra.mxu0 0
          %493 = vmatpush.bf16.msra.mxu0 0
          %494 = vmatpush.bf16.msra.mxu0 0
          %495 = vmatpush.bf16.msra.mxu0 %v474
          %496 = vmatpush.bf16.msra.mxu0 %v457
          %497 = vmatpush.bf16.msra.mxu0 %v455
          %498 = vmatmul.bf16.gmra.mxu0 %v467
          %v499 = vpop.f32.mrf.mxu0
          %v500 = vadd.f32 %v249, %v499
          %v501 = vpop.f32.mrf.mxu0
          %v502 = vadd.f32 %v254, %v501
          %503 = vdwg.mxu0
          %s504 = smul.u32 %s257, 4
          %s505 = smul.addr %s504, 8
          %s506 = scalar_lea.vmem %s236, %s505
          %507 = vst [vmem:[%s506] sm:$0xff] %v486
          %508 = vst [vmem:[%s506 + $0x8] sm:$0xff] %v500
          %509 = vst [vmem:[%s506 + $0x10] sm:$0xf] %v488
          %510 = vst [vmem:[%s506 + $0x18] sm:$0xf] %v502
        $region49: #{tpu_custom_call.1} parent=35 // loop_footer
          %s261 = sadd.s32 1, %s257
        $region50: #{tpu_custom_call.1} parent=35 // loop_footer_branch
          %256 = sbr.rel target = $region46
        $region51: #{tpu_custom_call.1} parent=35 // loop_exit
          _
        %p511 = scmp.lt.s32.totalorder %s19, 1
        %s512 = scalar_select %p511, %s19, 1
        %s513 = smul.addr %s512, 32
        %s514 = smul.addr %s513, 8
        %s515 = scalar_lea.vmem %s4, %s514
        // Predicated region
        $region52: #{tpu_custom_call.1} parent=35 // pred_check
          %p516 = pneg %p126
        $region53: #{tpu_custom_call.1} parent=35 // pred_check_branch
          %518 = sbr.rel (%p516) target = $region55
        $region54: #{tpu_custom_call.1} parent=35 // pred_region
          _
        $region55: #{tpu_custom_call.1} parent=35 // pred_fallthru
          _
      $region36: #{tpu_custom_call.1} parent=5 // pred_fallthru
        _
      %p519 = scmp.le.s32.totalorder 2, %s14
      // Predicated region
      $region56: #{tpu_custom_call.1} parent=5 // pred_check
        %p520 = pneg %p519
      $region57: #{tpu_custom_call.1} parent=5 // pred_check_branch
        %522 = sbr.rel (%p520) target = $region59
      $region58: #{tpu_custom_call.1} parent=5 // pred_region
        %s523 = ssub.s32 %s14, 2
        // Predicated region
        $region60: #{tpu_custom_call.1} parent=58 // pred_check
          %p524 = pneg %p132
        $region61: #{tpu_custom_call.1} parent=58 // pred_check_branch
          %526 = sbr.rel (%p524) target = $region63
        $region62: #{tpu_custom_call.1} parent=58 // pred_region
          %p527 = scmp.lt.s32.totalorder %s20, 1
          %s528 = scalar_select %p527, %s20, 1
          %s529 = smul.addr %s528, 32
          %s530 = smul.addr %s529, 8
          %s531 = scalar_lea.vmem %s4, %s530
        $region63: #{tpu_custom_call.1} parent=58 // pred_fallthru
          _
      $region59: #{tpu_custom_call.1} parent=5 // pred_fallthru
        _
    $region6: #{tpu_custom_call.1} parent=1 // loop_footer
      %s18 = sadd.s32 1, %s14
    $region7: #{tpu_custom_call.1} parent=1 // loop_footer_branch
      %13 = sbr.rel target = $region3
    $region8: #{tpu_custom_call.1} parent=1 // loop_exit
      _
    %532 = vsyncpa [#allocation4], 1
    %s533 = scalar_lea.sflag [#allocation4], 1
    %534 = vsyncpa %s533, 1
    %535 = vsyncpa [#allocation6], 1

</llo_original>
